<compile_context>
chip_gen: v7x
topology: tpu7x:2x2x1
jax: 0.10.0
libtpu: 0.0.40
codegen_flags: <defaults>
</compile_context>

<pallas_src>
import jax
import jax.numpy as jnp
from jax.experimental import pallas as pl
from jax.experimental.pallas import tpu as pltpu

SIZE = 10                                   # PolarNet(size=10)
DIMS = [2 * SIZE, 100, 64, 32, 32, 32]      # fc1..fc5 (in/out sizes)
TM_DEFAULT = 8192                           # max rows per grid step (multiple of 128)
MIN_SPLIT_STEPS = 4                         # keep >= this many grid steps when possible


def _round_up(n, m):
    return ((n + m - 1) // m) * m


def _prelu(x, a):
    # nn.PReLU() with a single learnable slope `a`.
    return jnp.where(x >= 0, x, a * x)


def polarnet_kernel(x_ref, w1s_ref, w2t_ref, w3t_ref, w4t_ref, w5t_ref,
                    alpha_ref, o_ref):
    # PReLU slopes from SMEM (read once, before any other work).
    a1 = alpha_ref[0]
    a2 = alpha_ref[1]
    a3 = alpha_ref[2]
    a4 = alpha_ref[3]
    a5 = alpha_ref[4]

    # Feature-major layout: batch rows live on the 128-wide lane axis.
    cosx = jnp.cos(x_ref[...])                                   # (1, TM) f32

    # Layer 1 folded: feat = [zeros(10) | cos(x)*ones(10)]
    #   => feat @ w1 == cos(x) * sum(w1[10:], axis=0)  (rank-1 VPU multiply)
    h = _prelu(w1s_ref[...] * cosx, a1)                          # (100, TM) f32

    # Layers 2..5: (out, in) @ (in, TM) on the MXU, f32 in / f32 accumulate.
    h = _prelu(jnp.dot(w2t_ref[...], h,
                       preferred_element_type=jnp.float32), a2)  # (64, TM)
    h = _prelu(jnp.dot(w3t_ref[...], h,
                       preferred_element_type=jnp.float32), a3)  # (32, TM)
    h = _prelu(jnp.dot(w4t_ref[...], h,
                       preferred_element_type=jnp.float32), a4)  # (32, TM)
    h = _prelu(jnp.dot(w5t_ref[...], h,
                       preferred_element_type=jnp.float32), a5)  # (32, TM)

    # In-kernel (32, TM) -> (TM, 32) transpose (XLU has slack) so the wrapper
    # only needs a free reshape — no extra HBM transpose pass after the kernel.
    o_ref[...] = h.T


@jax.jit
def polarnet_forward(x, w1, w2, w3, w4, w5, alphas):
    """x: (B, L) f32.  Weights wk: (in, out) (transposed vs PyTorch's (out, in))."""
    B, L = x.shape
    N = B * L

    # Pad rows only to a multiple of 128 (lane width); Pallas handles the
    # ragged last block via grid = cdiv(n128, tm).
    n128 = _round_up(N, 128)

    tm = min(TM_DEFAULT, n128)
    if n128 >= MIN_SPLIT_STEPS * 128:
        # Keep at least MIN_SPLIT_STEPS grid steps so ("parallel",) can split
        # the grid across v7x's two TensorCores.
        tm = min(tm, max(128, _round_up(pl.cdiv(n128, MIN_SPLIT_STEPS), 128)))
    grid = (pl.cdiv(n128, tm),)

    # Lane-dense (1, n128) input, batch rows on lanes.
    x_flat = jnp.pad(x.astype(jnp.float32).reshape(-1), (0, n128 - N))
    x_flat = x_flat.reshape(1, n128)

    # Fold the degenerate first layer (only the cos() half of the feature is
    # nonzero):  feat @ w1 == cos(x) * w1[SIZE:].sum(axis=0).
    w1s = jnp.sum(w1[SIZE:, :].astype(jnp.float32), axis=0).reshape(DIMS[1], 1)

    # Remaining weights transposed to (out, in) for the feature-major layout.
    w2t = w2.T.astype(jnp.float32)
    w3t = w3.T.astype(jnp.float32)
    w4t = w4.T.astype(jnp.float32)
    w5t = w5.T.astype(jnp.float32)

    def resident(shape):
        # Full-array block with a constant block index -> stays VMEM-resident
        # across the whole grid (no re-DMA of the ~60 KB of weights).
        return pl.BlockSpec(shape, lambda i: (0, 0))

    out = pl.pallas_call(
        polarnet_kernel,
        out_shape=jax.ShapeDtypeStruct((n128, DIMS[-1]), jnp.float32),
        grid=grid,
        in_specs=[
            pl.BlockSpec((1, tm), lambda i: (0, i)),            # x tile (lane-dense)
            resident((DIMS[1], 1)),                             # w1 folded (100, 1)
            resident((DIMS[2], DIMS[1])),                       # w2.T (64, 100)
            resident((DIMS[3], DIMS[2])),                       # w3.T (32, 64)
            resident((DIMS[4], DIMS[3])),                       # w4.T (32, 32)
            resident((DIMS[5], DIMS[4])),                       # w5.T (32, 32)
            pl.BlockSpec(memory_space=pltpu.MemorySpace.SMEM),  # PReLU slopes
        ],
        out_specs=pl.BlockSpec((tm, DIMS[-1]), lambda i: (i, 0)),
        compiler_params=pltpu.CompilerParams(
            dimension_semantics=("parallel",),
            vmem_limit_bytes=32 * 1024 * 1024,
        ),
    )(x_flat, w1s, w2t, w3t, w4t, w5t, alphas)

    # (n128, 32) -> (B, L, 32); pure reshape + slice, no HBM transpose.
    return out[:N].reshape(B, L, DIMS[-1])


def polarnet_reference(x, w1, w2, w3, w4, w5, alphas):
    """Plain-JAX f32 reference mirroring the PyTorch forward semantics."""
    B, L = x.shape
    xs = jnp.broadcast_to(jnp.cos(x)[..., None], (B, L, SIZE))
    ixs = jnp.zeros((B, L, SIZE), jnp.float32)   # pooled indices 0 / 150000
    h = jnp.concatenate([ixs, xs], axis=-1)
    for w, a in zip([w1, w2, w3, w4, w5], alphas):
        h = _prelu(jnp.dot(h, w), a)
    return h


def init_params(key):
    """Deterministic parameters; weights stored as (in, out)."""
    ws = []
    for i in range(5):
        key, sub = jax.random.split(key)
        fan_in = DIMS[i]
        bound = 1.0 / jnp.sqrt(fan_in)
        w = jax.random.uniform(sub, (DIMS[i], DIMS[i + 1]), jnp.float32,
                               minval=-bound, maxval=bound)
        ws.append(w)
    alphas = jnp.full((5,), 0.25, dtype=jnp.float32)  # PReLU default init
    return ws, alphas


if __name__ == "__main__":
    key = jax.random.PRNGKey(0)
    key, xkey1, xkey2 = jax.random.split(key, 3)

    (w1, w2, w3, w4, w5), alphas = init_params(key)

    # Test 1: small shape (single tile, padded to 128 rows).
    B, L = 2, 8
    x = jax.random.normal(xkey1, (B, L), dtype=jnp.float32)
    out = jax.block_until_ready(polarnet_forward(x, w1, w2, w3, w4, w5, alphas))
    ref = polarnet_reference(x, w1, w2, w3, w4, w5, alphas)
    assert out.shape == (B, L, 32), out.shape
    assert jnp.allclose(out, ref, rtol=2e-2, atol=2e-2), "mismatch vs reference (small)"

    # Test 2: multi-tile grid with a ragged last block and padded tail
    # (N = 600 -> n128 = 640, tm = 256, grid = 3, last block partially OOB).
    B2, L2 = 3, 200
    x2 = jax.random.normal(xkey2, (B2, L2), dtype=jnp.float32)
    out2 = jax.block_until_ready(polarnet_forward(x2, w1, w2, w3, w4, w5, alphas))
    ref2 = polarnet_reference(x2, w1, w2, w3, w4, w5, alphas)
    assert out2.shape == (B2, L2, 32), out2.shape
    assert jnp.allclose(out2, ref2, rtol=2e-2, atol=2e-2), "mismatch vs reference (multi-tile)"

    print("KERNEL_OK")
</pallas_src>

<mosaic_0001>
module attributes {stable_mosaic.version = 11 : i64} {
  func.func @polarnet_kernel(%arg0: i32, %arg1: memref<1x128xf32, #tpu.memory_space<vmem>>, %arg2: memref<100x1xf32, #tpu.memory_space<vmem>>, %arg3: memref<64x100xf32, #tpu.memory_space<vmem>>, %arg4: memref<32x64xf32, #tpu.memory_space<vmem>>, %arg5: memref<32x32xf32, #tpu.memory_space<vmem>>, %arg6: memref<32x32xf32, #tpu.memory_space<vmem>>, %arg7: memref<5xf32, #tpu.memory_space<smem>>, %arg8: memref<128x32xf32, #tpu.memory_space<vmem>>) attributes {dimension_semantics = [#tpu.dimension_semantics<parallel>], iteration_bounds = array<i64: 1>, scalar_prefetch = 0 : i64, scratch_operands = 0 : i64, tpu.core_type = #tpu.core_type<tc>, window_params = [{transform_indices = @transform_0, window_bounds = array<i64: 1, 128>}, {pipeline_mode = #tpu.pipeline_mode<synchronous>, transform_indices = @transform_1, window_bounds = array<i64: 100, 1>}, {pipeline_mode = #tpu.pipeline_mode<synchronous>, transform_indices = @transform_2, window_bounds = array<i64: 64, 100>}, {pipeline_mode = #tpu.pipeline_mode<synchronous>, transform_indices = @transform_3, window_bounds = array<i64: 32, 64>}, {pipeline_mode = #tpu.pipeline_mode<synchronous>, transform_indices = @transform_4, window_bounds = array<i64: 32, 32>}, {pipeline_mode = #tpu.pipeline_mode<synchronous>, transform_indices = @transform_5, window_bounds = array<i64: 32, 32>}, {transform_indices = @transform_6, window_bounds = array<i64: 5>}, {transform_indices = @transform_7, window_bounds = array<i64: 128, 32>}]} {
    %c0 = arith.constant 0 : index
    %0 = memref.load %arg7[%c0] : memref<5xf32, #tpu.memory_space<smem>>
    %c1 = arith.constant 1 : index
    %1 = memref.load %arg7[%c1] : memref<5xf32, #tpu.memory_space<smem>>
    %c2 = arith.constant 2 : index
    %2 = memref.load %arg7[%c2] : memref<5xf32, #tpu.memory_space<smem>>
    %c3 = arith.constant 3 : index
    %3 = memref.load %arg7[%c3] : memref<5xf32, #tpu.memory_space<smem>>
    %c4 = arith.constant 4 : index
    %4 = memref.load %arg7[%c4] : memref<5xf32, #tpu.memory_space<smem>>
    %c0_0 = arith.constant 0 : index
    %c0_1 = arith.constant 0 : index
    %5 = vector.load %arg1[%c0_0, %c0_1] : memref<1x128xf32, #tpu.memory_space<vmem>>, vector<1x128xf32>
    %6 = math.cos %5 : vector<1x128xf32>
    %c0_2 = arith.constant 0 : index
    %c0_3 = arith.constant 0 : index
    %7 = vector.load %arg2[%c0_2, %c0_3] : memref<100x1xf32, #tpu.memory_space<vmem>>, vector<100x1xf32>
    %8 = vector.broadcast %7 : vector<100x1xf32> to vector<100x128xf32>
    %9 = vector.broadcast %6 : vector<1x128xf32> to vector<100x128xf32>
    %10 = arith.mulf %8, %9 : vector<100x128xf32>
    %cst = arith.constant 0.000000e+00 : f32
    %11 = vector.broadcast %cst : f32 to vector<100x128xf32>
    %12 = arith.cmpf oge, %10, %11 : vector<100x128xf32>
    %13 = vector.broadcast %0 : f32 to vector<100x128xf32>
    %14 = arith.mulf %13, %10 : vector<100x128xf32>
    %15 = arith.select %12, %10, %14 : vector<100x128xi1>, vector<100x128xf32>
    %c0_4 = arith.constant 0 : index
    %c0_5 = arith.constant 0 : index
    %16 = vector.load %arg3[%c0_4, %c0_5] : memref<64x100xf32, #tpu.memory_space<vmem>>, vector<64x100xf32>
    %cst_6 = arith.constant dense<0.000000e+00> : vector<64x128xf32>
    %17 = tpu.matmul %16, %15, %cst_6 {dimension_numbers = #tpu.dot_dimension_numbers<[1], [0], [0], [1], [0, 0, 1, 1], [], []>} : vector<64x100xf32>, vector<100x128xf32>, vector<64x128xf32> -> vector<64x128xf32>
    %cst_7 = arith.constant 0.000000e+00 : f32
    %18 = vector.broadcast %cst_7 : f32 to vector<64x128xf32>
    %19 = arith.cmpf oge, %17, %18 : vector<64x128xf32>
    %20 = vector.broadcast %1 : f32 to vector<64x128xf32>
    %21 = arith.mulf %20, %17 : vector<64x128xf32>
    %22 = arith.select %19, %17, %21 : vector<64x128xi1>, vector<64x128xf32>
    %c0_8 = arith.constant 0 : index
    %c0_9 = arith.constant 0 : index
    %23 = vector.load %arg4[%c0_8, %c0_9] : memref<32x64xf32, #tpu.memory_space<vmem>>, vector<32x64xf32>
    %cst_10 = arith.constant dense<0.000000e+00> : vector<32x128xf32>
    %24 = tpu.matmul %23, %22, %cst_10 {dimension_numbers = #tpu.dot_dimension_numbers<[1], [0], [0], [1], [0, 0, 1, 1], [], []>} : vector<32x64xf32>, vector<64x128xf32>, vector<32x128xf32> -> vector<32x128xf32>
    %cst_11 = arith.constant 0.000000e+00 : f32
    %25 = vector.broadcast %cst_11 : f32 to vector<32x128xf32>
    %26 = arith.cmpf oge, %24, %25 : vector<32x128xf32>
    %27 = vector.broadcast %2 : f32 to vector<32x128xf32>
    %28 = arith.mulf %27, %24 : vector<32x128xf32>
    %29 = arith.select %26, %24, %28 : vector<32x128xi1>, vector<32x128xf32>
    %c0_12 = arith.constant 0 : index
    %c0_13 = arith.constant 0 : index
    %30 = vector.load %arg5[%c0_12, %c0_13] : memref<32x32xf32, #tpu.memory_space<vmem>>, vector<32x32xf32>
    %cst_14 = arith.constant dense<0.000000e+00> : vector<32x128xf32>
    %31 = tpu.matmul %30, %29, %cst_14 {dimension_numbers = #tpu.dot_dimension_numbers<[1], [0], [0], [1], [0, 0, 1, 1], [], []>} : vector<32x32xf32>, vector<32x128xf32>, vector<32x128xf32> -> vector<32x128xf32>
    %cst_15 = arith.constant 0.000000e+00 : f32
    %32 = vector.broadcast %cst_15 : f32 to vector<32x128xf32>
    %33 = arith.cmpf oge, %31, %32 : vector<32x128xf32>
    %34 = vector.broadcast %3 : f32 to vector<32x128xf32>
    %35 = arith.mulf %34, %31 : vector<32x128xf32>
    %36 = arith.select %33, %31, %35 : vector<32x128xi1>, vector<32x128xf32>
    %c0_16 = arith.constant 0 : index
    %c0_17 = arith.constant 0 : index
    %37 = vector.load %arg6[%c0_16, %c0_17] : memref<32x32xf32, #tpu.memory_space<vmem>>, vector<32x32xf32>
    %cst_18 = arith.constant dense<0.000000e+00> : vector<32x128xf32>
    %38 = tpu.matmul %37, %36, %cst_18 {dimension_numbers = #tpu.dot_dimension_numbers<[1], [0], [0], [1], [0, 0, 1, 1], [], []>} : vector<32x32xf32>, vector<32x128xf32>, vector<32x128xf32> -> vector<32x128xf32>
    %cst_19 = arith.constant 0.000000e+00 : f32
    %39 = vector.broadcast %cst_19 : f32 to vector<32x128xf32>
    %40 = arith.cmpf oge, %38, %39 : vector<32x128xf32>
    %41 = vector.broadcast %4 : f32 to vector<32x128xf32>
    %42 = arith.mulf %41, %38 : vector<32x128xf32>
    %43 = arith.select %40, %38, %42 : vector<32x128xi1>, vector<32x128xf32>
    %44 = tpu.transpose %43, [1, 0] : vector<32x128xf32> -> vector<128x32xf32>
    %c0_20 = arith.constant 0 : index
    %c0_21 = arith.constant 0 : index
    %45 = vector.load %arg8[%c0_20, %c0_21] : memref<128x32xf32, #tpu.memory_space<vmem>>, vector<128x32xf32>
    tpu.vector_store %arg8[%c0_20, %c0_21], %44 {strides = array<i32>} : memref<128x32xf32, #tpu.memory_space<vmem>>, vector<128x32xf32>,
    return
  }
  func.func @transform_0(%arg0: i32) -> (i32, i32) {
    %c0_i32 = arith.constant 0 : i32
    %c0_i32_0 = arith.constant 0 : i32
    return %c0_i32, %arg0 : i32, i32
  }
  func.func @transform_1(%arg0: i32) -> (i32, i32) {
    %c0_i32 = arith.constant 0 : i32
    %c0_i32_0 = arith.constant 0 : i32
    %c0_i32_1 = arith.constant 0 : i32
    return %c0_i32, %c0_i32_0 : i32, i32
  }
  func.func @transform_2(%arg0: i32) -> (i32, i32) {
    %c0_i32 = arith.constant 0 : i32
    %c0_i32_0 = arith.constant 0 : i32
    %c0_i32_1 = arith.constant 0 : i32
    return %c0_i32, %c0_i32_0 : i32, i32
  }
  func.func @transform_3(%arg0: i32) -> (i32, i32) {
    %c0_i32 = arith.constant 0 : i32
    %c0_i32_0 = arith.constant 0 : i32
    %c0_i32_1 = arith.constant 0 : i32
    return %c0_i32, %c0_i32_0 : i32, i32
  }
  func.func @transform_4(%arg0: i32) -> (i32, i32) {
    %c0_i32 = arith.constant 0 : i32
    %c0_i32_0 = arith.constant 0 : i32
    %c0_i32_1 = arith.constant 0 : i32
    return %c0_i32, %c0_i32_0 : i32, i32
  }
  func.func @transform_5(%arg0: i32) -> (i32, i32) {
    %c0_i32 = arith.constant 0 : i32
    %c0_i32_0 = arith.constant 0 : i32
    %c0_i32_1 = arith.constant 0 : i32
    return %c0_i32, %c0_i32_0 : i32, i32
  }
  func.func @transform_6(%arg0: i32) -> i32 {
    %c0_i32 = arith.constant 0 : i32
    %c0_i32_0 = arith.constant 0 : i32
    return %c0_i32 : i32
  }
  func.func @transform_7(%arg0: i32) -> (i32, i32) {
    %c0_i32 = arith.constant 0 : i32
    %c0_i32_0 = arith.constant 0 : i32
    return %arg0, %c0_i32 : i32, i32
  }
}

</mosaic_0001>

<llo_original>
// kernel: polarnet_forward.1
$region0: #{polarnet_forward.1}
  #allocation0 [shape = 'u32[]', space=smem, size = 0x4, offset = 0x4, fixed_abs, tag = 'smem constant byte address 0x4 - core index']
  #allocation1 [shape = 'u32[144,128]{1,0:T(1,128)}', space=vmem, size = 0x12000, scoped, tag = 'internal scratch']
  %s0 = inlined_call_operand.vmem [shape: f32[1,128], index: 0, kind: input, shape index: {}]
  %s1 = inlined_call_operand.vmem [shape: f32[100,1], index: 1, kind: input, shape index: {}]
  %s2 = inlined_call_operand.vmem [shape: f32[64,100], index: 2, kind: input, shape index: {}]
  %s3 = inlined_call_operand.vmem [shape: f32[32,64], index: 3, kind: input, shape index: {}]
  %s4 = inlined_call_operand.vmem [shape: f32[32,32], index: 4, kind: input, shape index: {}]
  %s5 = inlined_call_operand.vmem [shape: f32[32,32], index: 5, kind: input, shape index: {}]
  %s6 = inlined_call_operand.vmem [shape: f32[5], index: 6, kind: input, shape index: {}]
  %s7 = inlined_call_operand.vmem [shape: f32[128,32], index: 7, kind: output, shape index: {}]
  %s8 = sld [smem:[#allocation0]]
  $region42: #{polarnet_forward.1} parent=0
    _
  %s10 = ssub.s32 1, %s8
  %s11 = scalar_select 0, %s10, %s8
  $region1: #{polarnet_forward.1} parent=0
    #allocation2 [shape = 'u8[512]{0}', space=smem, size = 0x200, scoped, tag = 'input window, operand 6, single buffered']
    #allocation3 [shape = 's32[1]{0}', space=sflag, size = 0x4, scoped, tag = 'scoped memory for polarnet_forward.1']
    %12 = vsyncpa [#allocation3], 0
    // Predicated region
    $region2: #{polarnet_forward.1} parent=1 // pred_check
      _
    $region3: #{polarnet_forward.1} parent=1 // pred_check_branch
      %14 = sbr.rel (0) target = $region5
    $region4: #{polarnet_forward.1} parent=1 // pred_region
      _
    $region5: #{polarnet_forward.1} parent=1 // pred_fallthru
      _
    // Predicated region
    $region6: #{polarnet_forward.1} parent=1 // pred_check
      _
    $region7: #{polarnet_forward.1} parent=1 // pred_check_branch
      %16 = sbr.rel (0) target = $region9
    $region8: #{polarnet_forward.1} parent=1 // pred_region
      _
    $region9: #{polarnet_forward.1} parent=1 // pred_fallthru
      _
    // Predicated region
    $region10: #{polarnet_forward.1} parent=1 // pred_check
      _
    $region11: #{polarnet_forward.1} parent=1 // pred_check_branch
      %18 = sbr.rel (0) target = $region13
    $region12: #{polarnet_forward.1} parent=1 // pred_region
      _
    $region13: #{polarnet_forward.1} parent=1 // pred_fallthru
      _
    // Predicated region
    $region14: #{polarnet_forward.1} parent=1 // pred_check
      _
    $region15: #{polarnet_forward.1} parent=1 // pred_check_branch
      %20 = sbr.rel (0) target = $region17
    $region16: #{polarnet_forward.1} parent=1 // pred_region
      _
    $region17: #{polarnet_forward.1} parent=1 // pred_fallthru
      _
    // Predicated region
    $region18: #{polarnet_forward.1} parent=1 // pred_check
      _
    $region19: #{polarnet_forward.1} parent=1 // pred_check_branch
      %22 = sbr.rel (0) target = $region21
    $region20: #{polarnet_forward.1} parent=1 // pred_region
      _
    $region21: #{polarnet_forward.1} parent=1 // pred_fallthru
      _
    // Predicated region
    $region22: #{polarnet_forward.1} parent=1 // pred_check
      _
    $region23: #{polarnet_forward.1} parent=1 // pred_check_branch
      %24 = sbr.rel (0) target = $region25
    $region24: #{polarnet_forward.1} parent=1 // pred_region
      _
    $region25: #{polarnet_forward.1} parent=1 // pred_fallthru
      _
    // Predicated region
    $region26: #{polarnet_forward.1} parent=1 // pred_check
      _
    $region27: #{polarnet_forward.1} parent=1 // pred_check_branch
      %26 = sbr.rel (0) target = $region29
    $region28: #{polarnet_forward.1} parent=1 // pred_region
      %s28 = ssub.s32 16, 16
      %29 = vsyncadd [#allocation3], %s28
      %s31 = sshll.u32 %s6, 4
      %s32 = int_to_ptr.vmem [resolvable:$true] %s31
      %34 = dma.vmem_to_smem %s32, 16, [#allocation2], [#allocation3]
    $region29: #{polarnet_forward.1} parent=1 // pred_fallthru
      _
    // Predicated region
    $region30: #{polarnet_forward.1} parent=1 // pred_check
      _
    $region31: #{polarnet_forward.1} parent=1 // pred_check_branch
      %36 = sbr.rel (0) target = $region33
    $region32: #{polarnet_forward.1} parent=1 // pred_region
      %37 = dma.done [#allocation3], 16
    $region33: #{polarnet_forward.1} parent=1 // pred_fallthru
      _
    %38 = sfence
    %s39 = sld [smem:[#allocation2]]
    %s40 = sld [smem:[#allocation2 + $0x1]]
    %s41 = sld [smem:[#allocation2 + $0x2]]
    %s42 = sld [smem:[#allocation2 + $0x3]]
    %s43 = sld [smem:[#allocation2 + $0x4]]
    %v44 = vld [vmem:[%s0] sm:$0x1]
    %v45 = vand.u32 2147483647, %v44
    %vm46 = vcmp.le.f32.partialorder %v45, 0.7853982
    %vm47 = vcmp.lt.s32.totalorder %v44, 0
    %v48 = vand.u32 %v44, 2139095040
    %v49 = vshrl.u32 %v48, 23
    %v50 = vsub.s32 %v49, 127
    %v51 = vand.u32 2147483647, %v44
    %v52 = vand.u32 %v51, 8388607
    %v53 = vor.u32 %v52, 8388608
    %v54 = vsub.s32 0, %v53
    %v55 = vadd.s32 %v50, 1
    %vm56 = vcmp.gt.s32.totalorder %v55, 0
    %v57 = vsel %vm56, %v55, 0
    %v58 = vshrl.u32 %v57, 5
    %v59 = vand.u32 %v57, 31
    %v60 = vsub.s32 32, %v59
    %v61 = vshrl.u32 683565275, %v60
    %v62 = vshll.u32 683565275, %v59
    %v63 = vshrl.u32 2475754826, %v60
    %v64 = vor.u32 %v62, %v63
    %v65 = vshll.u32 2475754826, %v59
    %v66 = vshrl.u32 2131351028, %v60
    %v67 = vor.u32 %v65, %v66
    %v68 = vshll.u32 2131351028, %v59
    %v69 = vshrl.u32 2102212464, %v60
    %v70 = vor.u32 %v68, %v69
    %v71 = vshll.u32 2102212464, %v59
    %v72 = vshrl.u32 920167782, %v60
    %v73 = vor.u32 %v71, %v72
    %v74 = vshll.u32 920167782, %v59
    %v75 = vshrl.u32 1326507024, %v60
    %v76 = vor.u32 %v74, %v75
    %vm77 = vcmp.lt.s32.totalorder %v58, 1
    %vm78 = vcmp.lt.s32.totalorder %v58, 2
    %vm79 = vcmp.lt.s32.totalorder %v58, 3
    %vm80 = vcmp.lt.s32.totalorder %v58, 4
    %v81 = vsel %vm77, %v61, %v64
    %v82 = vsel %vm80, %v70, 2102212464
    %v83 = vsel %vm79, %v67, %v82
    %v84 = vsel %vm78, %v81, %v83
    %v85 = vsel %vm77, %v64, %v67
    %v86 = vsel %vm80, %v73, 920167782
    %v87 = vsel %vm79, %v70, %v86
    %v88 = vsel %vm78, %v85, %v87
    %v89 = vsel %vm77, %v67, %v70
    %v90 = vsel %vm80, %v76, 1326507024
    %v91 = vsel %vm79, %v73, %v90
    %v92 = vsel %vm78, %v89, %v91
    %v93 = vshll.u32 %v53, 8
    %v94 = vmul.u32.u64.compose %v93, %v92
    %v95 = vextract.low.u32 %v94
    %v96 = vextract.high.u32 %v94
    %v97 = vmul.u32.u64.compose %v93, %v88
    %v98 = vextract.low.u32 %v97
    %v99 = vextract.high.u32 %v97
    %v100 = vmul.u32 %v93, %v84
    %v101 = vadd.s32 %v96, %v98
    %vm102 = vc.u32 %v96, %v98
    %v103 = vadd.s32 %v99, 1
    %v104 = vsel %vm102, %v103, %v99
    %v105 = vadd.s32 %v100, %v104
    %v106 = vadd.s32 %v105, 536870912
    %v107 = vshrl.u32 %v106, 30
    %v108 = vshll.u32 %v107, 30
    %v109 = vsub.s32 %v105, %v108
    %vm110 = vcmp.lt.s32.totalorder %v109, 0
    %v111 = vsub.s32 0, %v109
    %v112 = vsel %vm110, %v111, %v109
    %v113 = vclz %v112
    %v114 = vsub.s32 %v113, 2
    %vm115 = vcmp.gt.s32.totalorder 0, %v114
    %v116 = vsel %vm115, 0, %v114
    %v117 = vsub.s32 32, %v116
    %v118 = vshll.u32 %v109, %v116
    %v119 = vshrl.u32 %v101, %v117
    %v120 = vor.u32 %v118, %v119
    %v121 = vsub.s32 4294967266, %v116
    %v122 = vadd.s32 %v121, 127
    %v123 = vshll.u32 %v122, 23
    %v124 = vor.u32 4788187, %v123
    %v125 = vand.u32 2147483647, %v124
    %v127 = vcvt.s32.f32 %v120
    %v128 = vmul.f32 %v127, %v125
    %v129 = vxor.u32 %v128, 2147483648
    %v130 = vsel %vm47, %v129, %v128
    %v131 = vsub.s32 4, %v107
    %v132 = vsel %vm47, %v131, %v107
    %v133 = vsel %vm46, %v44, %v130
    %v134 = vsel %vm46, 0, %v132
    %v135 = vcosq.f32.pop %v133
    %v136 = vsinq.f32.pop %v133
    %vm137 = vweird.f32 %v44
    %v138 = vand.u32 %v134, 3
    %vm139 = vcmp.lt.s32.totalorder %v138, 2
    %vm140 = vcmp.eq.s32.totalorder %v138, 0
    %v141 = vxor.u32 %v136, 2147483648
    %v142 = vsel %vm140, %v135, %v141
    %vm143 = vcmp.eq.s32.totalorder %v138, 2
    %v144 = vxor.u32 %v135, 2147483648
    %v145 = vsel %vm143, %v144, %v136
    %v146 = vsel %vm139, %v142, %v145
    %v147 = vsel %vm137, nan, %v146
    %v148 = vld [vmem:[%s1] sm:$0xff]
    %v149 = vld [vmem:[%s1 + $0x8] sm:$0xff]
    %v150 = vld [vmem:[%s1 + $0x10] sm:$0xff]
    %v151 = vld [vmem:[%s1 + $0x18] sm:$0xff]
    %v152 = vld [vmem:[%s1 + $0x20] sm:$0xff]
    %v153 = vld [vmem:[%s1 + $0x28] sm:$0xff]
    %v154 = vld [vmem:[%s1 + $0x30] sm:$0xff]
    %v155 = vld [vmem:[%s1 + $0x38] sm:$0xff]
    %v156 = vld [vmem:[%s1 + $0x40] sm:$0xff]
    %v157 = vld [vmem:[%s1 + $0x48] sm:$0xff]
    %v158 = vld [vmem:[%s1 + $0x50] sm:$0xff]
    %v159 = vld [vmem:[%s1 + $0x58] sm:$0xff]
    %v160 = vld [vmem:[%s1 + $0x60] sm:$0xf]
    %162 = vset.pattern.permute.xlu0 0
    %163 = vperm.xlu0 %162, %v148
    %v164 = vpop.permute.xlu0 %163
    %167 = vset.pattern.permute.xlu0 0
    %168 = vperm.xlu0 %167, %v149
    %v169 = vpop.permute.xlu0 %168
    %172 = vset.pattern.permute.xlu0 0
    %173 = vperm.xlu0 %172, %v150
    %v174 = vpop.permute.xlu0 %173
    %177 = vset.pattern.permute.xlu0 0
    %178 = vperm.xlu0 %177, %v151
    %v179 = vpop.permute.xlu0 %178
    %182 = vset.pattern.permute.xlu0 0
    %183 = vperm.xlu0 %182, %v152
    %v184 = vpop.permute.xlu0 %183
    %187 = vset.pattern.permute.xlu0 0
    %188 = vperm.xlu0 %187, %v153
    %v189 = vpop.permute.xlu0 %188
    %192 = vset.pattern.permute.xlu0 0
    %193 = vperm.xlu0 %192, %v154
    %v194 = vpop.permute.xlu0 %193
    %197 = vset.pattern.permute.xlu0 0
    %198 = vperm.xlu0 %197, %v155
    %v199 = vpop.permute.xlu0 %198
    %202 = vset.pattern.permute.xlu0 0
    %203 = vperm.xlu0 %202, %v156
    %v204 = vpop.permute.xlu0 %203
    %207 = vset.pattern.permute.xlu0 0
    %208 = vperm.xlu0 %207, %v157
    %v209 = vpop.permute.xlu0 %208
    %212 = vset.pattern.permute.xlu0 0
    %213 = vperm.xlu0 %212, %v158
    %v214 = vpop.permute.xlu0 %213
    %217 = vset.pattern.permute.xlu0 0
    %218 = vperm.xlu0 %217, %v159
    %v219 = vpop.permute.xlu0 %218
    %222 = vset.pattern.permute.xlu0 0
    %223 = vperm.xlu0 %222, %v160
    %v224 = vpop.permute.xlu0 %223
    %v227 = vlaneseq
    %v228 = vshrl.u32 %v227, 7
    %v229 = vsub.s32 0, %v228
    %v230 = vrot.slane %v147, %v229
    %v232 = vmul.f32 %v164, %v230
    %v233 = vmul.f32 %v169, %v230
    %v234 = vmul.f32 %v174, %v230
    %v235 = vmul.f32 %v179, %v230
    %v236 = vmul.f32 %v184, %v230
    %v237 = vmul.f32 %v189, %v230
    %v238 = vmul.f32 %v194, %v230
    %v239 = vmul.f32 %v199, %v230
    %v240 = vmul.f32 %v204, %v230
    %v241 = vmul.f32 %v209, %v230
    %v242 = vmul.f32 %v214, %v230
    %v243 = vmul.f32 %v219, %v230
    %v244 = vmul.f32 %v224, %v230
    %vm245 = vcmp.ge.f32.partialorder %v232, 0.0
    %vm246 = vcmp.ge.f32.partialorder %v233, 0.0
    %vm247 = vcmp.ge.f32.partialorder %v234, 0.0
    %vm248 = vcmp.ge.f32.partialorder %v235, 0.0
    %vm249 = vcmp.ge.f32.partialorder %v236, 0.0
    %vm250 = vcmp.ge.f32.partialorder %v237, 0.0
    %vm251 = vcmp.ge.f32.partialorder %v238, 0.0
    %vm252 = vcmp.ge.f32.partialorder %v239, 0.0
    %vm253 = vcmp.ge.f32.partialorder %v240, 0.0
    %vm254 = vcmp.ge.f32.partialorder %v241, 0.0
    %vm255 = vcmp.ge.f32.partialorder %v242, 0.0
    %vm256 = vcmp.ge.f32.partialorder %v243, 0.0
    %vm257 = vcmp.ge.f32.partialorder %v244, 0.0
    %v258 = vstv %s39
    %v259 = vmul.f32 %v258, %v232
    %v260 = vmul.f32 %v258, %v233
    %v261 = vmul.f32 %v258, %v234
    %v262 = vmul.f32 %v258, %v235
    %v263 = vmul.f32 %v258, %v236
    %v264 = vmul.f32 %v258, %v237
    %v265 = vmul.f32 %v258, %v238
    %v266 = vmul.f32 %v258, %v239
    %v267 = vmul.f32 %v258, %v240
    %v268 = vmul.f32 %v258, %v241
    %v269 = vmul.f32 %v258, %v242
    %v270 = vmul.f32 %v258, %v243
    %v271 = vmul.f32 %v258, %v244
    %v272 = vsel %vm245, %v232, %v259
    %v273 = vsel %vm246, %v233, %v260
    %v274 = vsel %vm247, %v234, %v261
    %v275 = vsel %vm248, %v235, %v262
    %v276 = vsel %vm249, %v236, %v263
    %v277 = vsel %vm250, %v237, %v264
    %v278 = vsel %vm251, %v238, %v265
    %v279 = vsel %vm252, %v239, %v266
    %v280 = vsel %vm253, %v240, %v267
    %v281 = vsel %vm254, %v241, %v268
    %v282 = vsel %vm255, %v242, %v269
    %v283 = vsel %vm256, %v243, %v270
    %v284 = vsel %vm257, %v244, %v271
    %v285 = vld [vmem:[%s2] sm:$0xff]
    %v286 = vld [vmem:[%s2 + $0x8] sm:$0xff]
    %v287 = vld [vmem:[%s2 + $0x10] sm:$0xff]
    %v288 = vld [vmem:[%s2 + $0x18] sm:$0xff]
    %v289 = vld [vmem:[%s2 + $0x20] sm:$0xff]
    %v290 = vld [vmem:[%s2 + $0x28] sm:$0xff]
    %v291 = vld [vmem:[%s2 + $0x30] sm:$0xff]
    %v292 = vld [vmem:[%s2 + $0x38] sm:$0xff]
    %vm293 = vcmask 818176
    %v295 = vsel %vm293, %v285, 0
    %v298 = vsel %vm293, %v286, 0
    %v301 = vsel %vm293, %v287, 0
    %v304 = vsel %vm293, %v288, 0
    %v307 = vsel %vm293, %v289, 0
    %v310 = vsel %vm293, %v290, 0
    %v313 = vsel %vm293, %v291, 0
    %v316 = vsel %vm293, %v292, 0
    %vm318 = vcmask 1043456
    %v320 = vsel %vm318, %v284, 0
    %322 = vmatprep.subr.mxu0 0.0
    %323 = vmatpush1.msra.mxu0 %v272
    %324 = vmatprep.subr.mxu0 0.0
    %325 = vmatpush1.msra.mxu0 %v273
    %326 = vmatprep.subr.mxu0 0.0
    %327 = vmatpush1.msra.mxu0 %v274
    %328 = vmatprep.subr.mxu0 0.0
    %329 = vmatpush1.msra.mxu0 %v275
    %330 = vmatprep.subr.mxu0 0.0
    %331 = vmatpush1.msra.mxu0 %v276
    %332 = vmatprep.subr.mxu0 0.0
    %333 = vmatpush1.msra.mxu0 %v277
    %334 = vmatprep.subr.mxu0 0.0
    %335 = vmatpush1.msra.mxu0 %v278
    %336 = vmatprep.subr.mxu0 0.0
    %337 = vmatpush1.msra.mxu0 %v279
    %338 = vmatprep.subr.mxu0 0.0
    %339 = vmatpush1.msra.mxu0 %v280
    %340 = vmatprep.subr.mxu0 0.0
    %341 = vmatpush1.msra.mxu0 %v281
    %342 = vmatprep.subr.mxu0 0.0
    %343 = vmatpush1.msra.mxu0 %v282
    %344 = vmatprep.subr.mxu0 0.0
    %345 = vmatpush1.msra.mxu0 %v283
    %346 = vmatprep.subr.mxu0 0.0
    %347 = vmatpush1.msra.mxu0 %v320
    %348 = vmatprep.subr.mxu0 0.0
    %349 = vmatpush1.msra.mxu0 0.0
    %350 = vmatprep.subr.mxu0 0.0
    %351 = vmatpush1.msra.mxu0 0.0
    %352 = vmatprep.subr.mxu0 0.0
    %353 = vmatpush1.msra.mxu0 0.0
    %354 = vmatprep.subr.mxu0 0.0
    %355 = vmatpush1.msra.mxu0 0.0
    %356 = vmatprep.subr.mxu0 0.0
    %357 = vmatpush1.msra.mxu0 0.0
    %358 = vmatprep.subr.mxu0 0.0
    %359 = vmatpush1.msra.mxu0 0.0
    %360 = vmatprep.subr.mxu0 0.0
    %361 = vmatpush1.msra.mxu0 0.0
    %362 = vmatprep.subr.mxu0 0.0
    %363 = vmatpush1.msra.mxu0 0.0
    %364 = vmatprep.subr.mxu0 0.0
    %365 = vmatpush1.msra.mxu0 0.0
    %366 = vmatprep.subr.mxu0 0.0
    %367 = vmatpush1.msra.mxu0 0.0
    %368 = vmatprep.subr.mxu0 0.0
    %369 = vmatpush1.msra.mxu0 0.0
    %370 = vmatprep.subr.mxu0 0.0
    %371 = vmatpush1.msra.mxu0 0.0
    %372 = vmatprep.subr.mxu0 0.0
    %373 = vmatpush1.msra.mxu0 0.0
    %374 = vmatprep.subr.mxu0 0.0
    %375 = vmatpush1.msra.mxu0 0.0
    %376 = vmatprep.subr.mxu0 0.0
    %377 = vmatpush1.msra.mxu0 0.0
    %378 = vmatprep.subr.mxu0 0.0
    %379 = vmatpush1.msra.mxu0 0.0
    %380 = vmatprep.subr.mxu0 0.0
    %381 = vmatpush1.msra.mxu0 0.0
    %382 = vmatprep.subr.mxu0 0.0
    %383 = vmatpush1.msra.mxu0 0.0
    %384 = vmatprep.subr.mxu0 0.0
    %385 = vmatpush1.msra.mxu0 0.0
    %386 = vmatprep.mubr.f32.mxu0 0.0
    %387 = vmatmul.mubr.f32.gmra.mrb[0].mxu0 %v295
    %v388 = vpop.f32.mrb[0].mxu0
    %v389 = vadd.f32 0.0, %v388
    %v390 = vpop.f32.mrb[0].mxu0
    %391 = vmatprep.mubr.f32.mxu0 0.0
    %392 = vmatmul.mubr.f32.gmra.mrb[0].mxu0 %v298
    %v393 = vpop.f32.mrb[0].mxu0
    %v394 = vadd.f32 0.0, %v393
    %v395 = vpop.f32.mrb[0].mxu0
    %396 = vmatprep.mubr.f32.mxu0 0.0
    %397 = vmatmul.mubr.f32.gmra.mrb[0].mxu0 %v301
    %v398 = vpop.f32.mrb[0].mxu0
    %v399 = vadd.f32 0.0, %v398
    %v400 = vpop.f32.mrb[0].mxu0
    %401 = vmatprep.mubr.f32.mxu0 0.0
    %402 = vmatmul.mubr.f32.gmra.mrb[0].mxu0 %v304
    %v403 = vpop.f32.mrb[0].mxu0
    %v404 = vadd.f32 0.0, %v403
    %v405 = vpop.f32.mrb[0].mxu0
    %406 = vmatprep.mubr.f32.mxu0 0.0
    %407 = vmatmul.mubr.f32.gmra.mrb[0].mxu0 %v307
    %v408 = vpop.f32.mrb[0].mxu0
    %v409 = vadd.f32 0.0, %v408
    %v410 = vpop.f32.mrb[0].mxu0
    %411 = vmatprep.mubr.f32.mxu0 0.0
    %412 = vmatmul.mubr.f32.gmra.mrb[0].mxu0 %v310
    %v413 = vpop.f32.mrb[0].mxu0
    %v414 = vadd.f32 0.0, %v413
    %v415 = vpop.f32.mrb[0].mxu0
    %416 = vmatprep.mubr.f32.mxu0 0.0
    %417 = vmatmul.mubr.f32.gmra.mrb[0].mxu0 %v313
    %v418 = vpop.f32.mrb[0].mxu0
    %v419 = vadd.f32 0.0, %v418
    %v420 = vpop.f32.mrb[0].mxu0
    %421 = vmatprep.mubr.f32.mxu0 0.0
    %422 = vmatmul.mubr.f32.gmra.mrb[0].mxu0 %v316
    %v423 = vpop.f32.mrb[0].mxu0
    %v424 = vadd.f32 0.0, %v423
    %v425 = vpop.f32.mrb[0].mxu0
    %426 = vdwg.mxu0
    %vm427 = vcmp.ge.f32.partialorder %v389, 0.0
    %vm428 = vcmp.ge.f32.partialorder %v394, 0.0
    %vm429 = vcmp.ge.f32.partialorder %v399, 0.0
    %vm430 = vcmp.ge.f32.partialorder %v404, 0.0
    %vm431 = vcmp.ge.f32.partialorder %v409, 0.0
    %vm432 = vcmp.ge.f32.partialorder %v414, 0.0
    %vm433 = vcmp.ge.f32.partialorder %v419, 0.0
    %vm434 = vcmp.ge.f32.partialorder %v424, 0.0
    %v435 = vstv %s40
    %v436 = vmul.f32 %v435, %v389
    %v437 = vmul.f32 %v435, %v394
    %v438 = vmul.f32 %v435, %v399
    %v439 = vmul.f32 %v435, %v404
    %v440 = vmul.f32 %v435, %v409
    %v441 = vmul.f32 %v435, %v414
    %v442 = vmul.f32 %v435, %v419
    %v443 = vmul.f32 %v435, %v424
    %v444 = vsel %vm427, %v389, %v436
    %v445 = vsel %vm428, %v394, %v437
    %v446 = vsel %vm429, %v399, %v438
    %v447 = vsel %vm430, %v404, %v439
    %v448 = vsel %vm431, %v409, %v440
    %v449 = vsel %vm432, %v414, %v441
    %v450 = vsel %vm433, %v419, %v442
    %v451 = vsel %vm434, %v424, %v443
    %v452 = vld [vmem:[%s3] sm:$0xff]
    %v453 = vld [vmem:[%s3 + $0x8] sm:$0xff]
    %v454 = vld [vmem:[%s3 + $0x10] sm:$0xff]
    %v455 = vld [vmem:[%s3 + $0x18] sm:$0xff]
    %vm456 = vcmask 523264
    %v458 = vsel %vm456, %v452, 0
    %v461 = vsel %vm456, %v453, 0
    %v464 = vsel %vm456, %v454, 0
    %v467 = vsel %vm456, %v455, 0
    %469 = vmatprep.subr.mxu0 0.0
    %470 = vmatpush1.msra.mxu0 %v444
    %471 = vmatprep.subr.mxu0 0.0
    %472 = vmatpush1.msra.mxu0 %v445
    %473 = vmatprep.subr.mxu0 0.0
    %474 = vmatpush1.msra.mxu0 %v446
    %475 = vmatprep.subr.mxu0 0.0
    %476 = vmatpush1.msra.mxu0 %v447
    %477 = vmatprep.subr.mxu0 0.0
    %478 = vmatpush1.msra.mxu0 %v448
    %479 = vmatprep.subr.mxu0 0.0
    %480 = vmatpush1.msra.mxu0 %v449
    %481 = vmatprep.subr.mxu0 0.0
    %482 = vmatpush1.msra.mxu0 %v450
    %483 = vmatprep.subr.mxu0 0.0
    %484 = vmatpush1.msra.mxu0 %v451
    %485 = vmatprep.subr.mxu0 0.0
    %486 = vmatpush1.msra.mxu0 0.0
    %487 = vmatprep.subr.mxu0 0.0
    %488 = vmatpush1.msra.mxu0 0.0
    %489 = vmatprep.subr.mxu0 0.0
    %490 = vmatpush1.msra.mxu0 0.0
    %491 = vmatprep.subr.mxu0 0.0
    %492 = vmatpush1.msra.mxu0 0.0
    %493 = vmatprep.subr.mxu0 0.0
    %494 = vmatpush1.msra.mxu0 0.0
    %495 = vmatprep.subr.mxu0 0.0
    %496 = vmatpush1.msra.mxu0 0.0
    %497 = vmatprep.subr.mxu0 0.0
    %498 = vmatpush1.msra.mxu0 0.0
    %499 = vmatprep.subr.mxu0 0.0
    %500 = vmatpush1.msra.mxu0 0.0
    %501 = vmatprep.subr.mxu0 0.0
    %502 = vmatpush1.msra.mxu0 0.0
    %503 = vmatprep.subr.mxu0 0.0
    %504 = vmatpush1.msra.mxu0 0.0
    %505 = vmatprep.subr.mxu0 0.0
    %506 = vmatpush1.msra.mxu0 0.0
    %507 = vmatprep.subr.mxu0 0.0
    %508 = vmatpush1.msra.mxu0 0.0
    %509 = vmatprep.subr.mxu0 0.0
    %510 = vmatpush1.msra.mxu0 0.0
    %511 = vmatprep.subr.mxu0 0.0
    %512 = vmatpush1.msra.mxu0 0.0
    %513 = vmatprep.subr.mxu0 0.0
    %514 = vmatpush1.msra.mxu0 0.0
    %515 = vmatprep.subr.mxu0 0.0
    %516 = vmatpush1.msra.mxu0 0.0
    %517 = vmatprep.subr.mxu0 0.0
    %518 = vmatpush1.msra.mxu0 0.0
    %519 = vmatprep.subr.mxu0 0.0
    %520 = vmatpush1.msra.mxu0 0.0
    %521 = vmatprep.subr.mxu0 0.0
    %522 = vmatpush1.msra.mxu0 0.0
    %523 = vmatprep.subr.mxu0 0.0
    %524 = vmatpush1.msra.mxu0 0.0
    %525 = vmatprep.subr.mxu0 0.0
    %526 = vmatpush1.msra.mxu0 0.0
    %527 = vmatprep.subr.mxu0 0.0
    %528 = vmatpush1.msra.mxu0 0.0
    %529 = vmatprep.subr.mxu0 0.0
    %530 = vmatpush1.msra.mxu0 0.0
    %531 = vmatprep.subr.mxu0 0.0
    %532 = vmatpush1.msra.mxu0 0.0
    %533 = vmatprep.mubr.f32.mxu0 0.0
    %534 = vmatmul.mubr.f32.gmra.mrb[0].mxu0 %v458
    %v535 = vpop.f32.mrb[0].mxu0
    %v536 = vadd.f32 0.0, %v535
    %v537 = vpop.f32.mrb[0].mxu0
    %538 = vmatprep.mubr.f32.mxu0 0.0
    %539 = vmatmul.mubr.f32.gmra.mrb[0].mxu0 %v461
    %v540 = vpop.f32.mrb[0].mxu0
    %v541 = vadd.f32 0.0, %v540
    %v542 = vpop.f32.mrb[0].mxu0
    %543 = vmatprep.mubr.f32.mxu0 0.0
    %544 = vmatmul.mubr.f32.gmra.mrb[0].mxu0 %v464
    %v545 = vpop.f32.mrb[0].mxu0
    %v546 = vadd.f32 0.0, %v545
    %v547 = vpop.f32.mrb[0].mxu0
    %548 = vmatprep.mubr.f32.mxu0 0.0
    %549 = vmatmul.mubr.f32.gmra.mrb[0].mxu0 %v467
    %v550 = vpop.f32.mrb[0].mxu0
    %v551 = vadd.f32 0.0, %v550
    %v552 = vpop.f32.mrb[0].mxu0
    %553 = vdwg.mxu0
    %vm554 = vcmp.ge.f32.partialorder %v536, 0.0
    %vm555 = vcmp.ge.f32.partialorder %v541, 0.0
    %vm556 = vcmp.ge.f32.partialorder %v546, 0.0
    %vm557 = vcmp.ge.f32.partialorder %v551, 0.0
    %v558 = vstv %s41
    %v559 = vmul.f32 %v558, %v536
    %v560 = vmul.f32 %v558, %v541
    %v561 = vmul.f32 %v558, %v546
    %v562 = vmul.f32 %v558, %v551
    %v563 = vsel %vm554, %v536, %v559
    %v564 = vsel %vm555, %v541, %v560
    %v565 = vsel %vm556, %v546, %v561
    %v566 = vsel %vm557, %v551, %v562
    %v567 = vld [vmem:[%s4] sm:$0xff]
    %v568 = vld [vmem:[%s4 + $0x8] sm:$0xff]
    %v569 = vld [vmem:[%s4 + $0x10] sm:$0xff]
    %v570 = vld [vmem:[%s4 + $0x18] sm:$0xff]
    %vm571 = vcmask 261120
    %v573 = vsel %vm571, %v567, 0
    %v576 = vsel %vm571, %v568, 0
    %v579 = vsel %vm571, %v569, 0
    %v582 = vsel %vm571, %v570, 0
    %584 = vmatprep.subr.mxu0 0.0
    %585 = vmatpush1.msra.mxu0 %v563
    %586 = vmatprep.subr.mxu0 0.0
    %587 = vmatpush1.msra.mxu0 %v564
    %588 = vmatprep.subr.mxu0 0.0
    %589 = vmatpush1.msra.mxu0 %v565
    %590 = vmatprep.subr.mxu0 0.0
    %591 = vmatpush1.msra.mxu0 %v566
    %592 = vmatprep.subr.mxu0 0.0
    %593 = vmatpush1.msra.mxu0 0.0
    %594 = vmatprep.subr.mxu0 0.0
    %595 = vmatpush1.msra.mxu0 0.0
    %596 = vmatprep.subr.mxu0 0.0
    %597 = vmatpush1.msra.mxu0 0.0
    %598 = vmatprep.subr.mxu0 0.0
    %599 = vmatpush1.msra.mxu0 0.0
    %600 = vmatprep.subr.mxu0 0.0
    %601 = vmatpush1.msra.mxu0 0.0
    %602 = vmatprep.subr.mxu0 0.0
    %603 = vmatpush1.msra.mxu0 0.0
    %604 = vmatprep.subr.mxu0 0.0
    %605 = vmatpush1.msra.mxu0 0.0
    %606 = vmatprep.subr.mxu0 0.0
    %607 = vmatpush1.msra.mxu0 0.0
    %608 = vmatprep.subr.mxu0 0.0
    %609 = vmatpush1.msra.mxu0 0.0
    %610 = vmatprep.subr.mxu0 0.0
    %611 = vmatpush1.msra.mxu0 0.0
    %612 = vmatprep.subr.mxu0 0.0
    %613 = vmatpush1.msra.mxu0 0.0
    %614 = vmatprep.subr.mxu0 0.0
    %615 = vmatpush1.msra.mxu0 0.0
    %616 = vmatprep.subr.mxu0 0.0
    %617 = vmatpush1.msra.mxu0 0.0
    %618 = vmatprep.subr.mxu0 0.0
    %619 = vmatpush1.msra.mxu0 0.0
    %620 = vmatprep.subr.mxu0 0.0
    %621 = vmatpush1.msra.mxu0 0.0
    %622 = vmatprep.subr.mxu0 0.0
    %623 = vmatpush1.msra.mxu0 0.0
    %624 = vmatprep.subr.mxu0 0.0
    %625 = vmatpush1.msra.mxu0 0.0
    %626 = vmatprep.subr.mxu0 0.0
    %627 = vmatpush1.msra.mxu0 0.0
    %628 = vmatprep.subr.mxu0 0.0
    %629 = vmatpush1.msra.mxu0 0.0
    %630 = vmatprep.subr.mxu0 0.0
    %631 = vmatpush1.msra.mxu0 0.0
    %632 = vmatprep.subr.mxu0 0.0
    %633 = vmatpush1.msra.mxu0 0.0
    %634 = vmatprep.subr.mxu0 0.0
    %635 = vmatpush1.msra.mxu0 0.0
    %636 = vmatprep.subr.mxu0 0.0
    %637 = vmatpush1.msra.mxu0 0.0
    %638 = vmatprep.subr.mxu0 0.0
    %639 = vmatpush1.msra.mxu0 0.0
    %640 = vmatprep.subr.mxu0 0.0
    %641 = vmatpush1.msra.mxu0 0.0
    %642 = vmatprep.subr.mxu0 0.0
    %643 = vmatpush1.msra.mxu0 0.0
    %644 = vmatprep.subr.mxu0 0.0
    %645 = vmatpush1.msra.mxu0 0.0
    %646 = vmatprep.subr.mxu0 0.0
    %647 = vmatpush1.msra.mxu0 0.0
    %648 = vmatprep.mubr.f32.mxu0 0.0
    %649 = vmatmul.mubr.f32.gmra.mrb[0].mxu0 %v573
    %v650 = vpop.f32.mrb[0].mxu0
    %v651 = vadd.f32 0.0, %v650
    %v652 = vpop.f32.mrb[0].mxu0
    %653 = vmatprep.mubr.f32.mxu0 0.0
    %654 = vmatmul.mubr.f32.gmra.mrb[0].mxu0 %v576
    %v655 = vpop.f32.mrb[0].mxu0
    %v656 = vadd.f32 0.0, %v655
    %v657 = vpop.f32.mrb[0].mxu0
    %658 = vmatprep.mubr.f32.mxu0 0.0
    %659 = vmatmul.mubr.f32.gmra.mrb[0].mxu0 %v579
    %v660 = vpop.f32.mrb[0].mxu0
    %v661 = vadd.f32 0.0, %v660
    %v662 = vpop.f32.mrb[0].mxu0
    %663 = vmatprep.mubr.f32.mxu0 0.0
    %664 = vmatmul.mubr.f32.gmra.mrb[0].mxu0 %v582
    %v665 = vpop.f32.mrb[0].mxu0
    %v666 = vadd.f32 0.0, %v665
    %v667 = vpop.f32.mrb[0].mxu0
    %668 = vdwg.mxu0
    %vm669 = vcmp.ge.f32.partialorder %v651, 0.0
    %vm670 = vcmp.ge.f32.partialorder %v656, 0.0
    %vm671 = vcmp.ge.f32.partialorder %v661, 0.0
    %vm672 = vcmp.ge.f32.partialorder %v666, 0.0
    %v673 = vstv %s42
    %v674 = vmul.f32 %v673, %v651
    %v675 = vmul.f32 %v673, %v656
    %v676 = vmul.f32 %v673, %v661
    %v677 = vmul.f32 %v673, %v666
    %v678 = vsel %vm669, %v651, %v674
    %v679 = vsel %vm670, %v656, %v675
    %v680 = vsel %vm671, %v661, %v676
    %v681 = vsel %vm672, %v666, %v677
    %v682 = vld [vmem:[%s5] sm:$0xff]
    %v683 = vld [vmem:[%s5 + $0x8] sm:$0xff]
    %v684 = vld [vmem:[%s5 + $0x10] sm:$0xff]
    %v685 = vld [vmem:[%s5 + $0x18] sm:$0xff]
    %v687 = vsel %vm571, %v682, 0
    %v690 = vsel %vm571, %v683, 0
    %v693 = vsel %vm571, %v684, 0
    %v696 = vsel %vm571, %v685, 0
    %698 = vmatprep.subr.mxu0 0.0
    %699 = vmatpush1.msra.mxu0 %v678
    %700 = vmatprep.subr.mxu0 0.0
    %701 = vmatpush1.msra.mxu0 %v679
    %702 = vmatprep.subr.mxu0 0.0
    %703 = vmatpush1.msra.mxu0 %v680
    %704 = vmatprep.subr.mxu0 0.0
    %705 = vmatpush1.msra.mxu0 %v681
    %706 = vmatprep.subr.mxu0 0.0
    %707 = vmatpush1.msra.mxu0 0.0
    %708 = vmatprep.subr.mxu0 0.0
    %709 = vmatpush1.msra.mxu0 0.0
    %710 = vmatprep.subr.mxu0 0.0
    %711 = vmatpush1.msra.mxu0 0.0
    %712 = vmatprep.subr.mxu0 0.0
    %713 = vmatpush1.msra.mxu0 0.0
    %714 = vmatprep.subr.mxu0 0.0
    %715 = vmatpush1.msra.mxu0 0.0
    %716 = vmatprep.subr.mxu0 0.0
    %717 = vmatpush1.msra.mxu0 0.0
    %718 = vmatprep.subr.mxu0 0.0
    %719 = vmatpush1.msra.mxu0 0.0
    %720 = vmatprep.subr.mxu0 0.0
    %721 = vmatpush1.msra.mxu0 0.0
    %722 = vmatprep.subr.mxu0 0.0
    %723 = vmatpush1.msra.mxu0 0.0
    %724 = vmatprep.subr.mxu0 0.0
    %725 = vmatpush1.msra.mxu0 0.0
    %726 = vmatprep.subr.mxu0 0.0
    %727 = vmatpush1.msra.mxu0 0.0
    %728 = vmatprep.subr.mxu0 0.0
    %729 = vmatpush1.msra.mxu0 0.0
    %730 = vmatprep.subr.mxu0 0.0
    %731 = vmatpush1.msra.mxu0 0.0
    %732 = vmatprep.subr.mxu0 0.0
    %733 = vmatpush1.msra.mxu0 0.0
    %734 = vmatprep.subr.mxu0 0.0
    %735 = vmatpush1.msra.mxu0 0.0
    %736 = vmatprep.subr.mxu0 0.0
    %737 = vmatpush1.msra.mxu0 0.0
    %738 = vmatprep.subr.mxu0 0.0
    %739 = vmatpush1.msra.mxu0 0.0
    %740 = vmatprep.subr.mxu0 0.0
    %741 = vmatpush1.msra.mxu0 0.0
    %742 = vmatprep.subr.mxu0 0.0
    %743 = vmatpush1.msra.mxu0 0.0
    %744 = vmatprep.subr.mxu0 0.0
    %745 = vmatpush1.msra.mxu0 0.0
    %746 = vmatprep.subr.mxu0 0.0
    %747 = vmatpush1.msra.mxu0 0.0
    %748 = vmatprep.subr.mxu0 0.0
    %749 = vmatpush1.msra.mxu0 0.0
    %750 = vmatprep.subr.mxu0 0.0
    %751 = vmatpush1.msra.mxu0 0.0
    %752 = vmatprep.subr.mxu0 0.0
    %753 = vmatpush1.msra.mxu0 0.0
    %754 = vmatprep.subr.mxu0 0.0
    %755 = vmatpush1.msra.mxu0 0.0
    %756 = vmatprep.subr.mxu0 0.0
    %757 = vmatpush1.msra.mxu0 0.0
    %758 = vmatprep.subr.mxu0 0.0
    %759 = vmatpush1.msra.mxu0 0.0
    %760 = vmatprep.subr.mxu0 0.0
    %761 = vmatpush1.msra.mxu0 0.0
    %762 = vmatprep.mubr.f32.mxu0 0.0
    %763 = vmatmul.mubr.f32.gmra.mrb[0].mxu0 %v687
    %v764 = vpop.f32.mrb[0].mxu0
    %v765 = vadd.f32 0.0, %v764
    %v766 = vpop.f32.mrb[0].mxu0
    %767 = vmatprep.mubr.f32.mxu0 0.0
    %768 = vmatmul.mubr.f32.gmra.mrb[0].mxu0 %v690
    %v769 = vpop.f32.mrb[0].mxu0
    %v770 = vadd.f32 0.0, %v769
    %v771 = vpop.f32.mrb[0].mxu0
    %772 = vmatprep.mubr.f32.mxu0 0.0
    %773 = vmatmul.mubr.f32.gmra.mrb[0].mxu0 %v693
    %v774 = vpop.f32.mrb[0].mxu0
    %v775 = vadd.f32 0.0, %v774
    %v776 = vpop.f32.mrb[0].mxu0
    %777 = vmatprep.mubr.f32.mxu0 0.0
    %778 = vmatmul.mubr.f32.gmra.mrb[0].mxu0 %v696
    %v779 = vpop.f32.mrb[0].mxu0
    %v780 = vadd.f32 0.0, %v779
    %v781 = vpop.f32.mrb[0].mxu0
    %782 = vdwg.mxu0
    %vm783 = vcmp.ge.f32.partialorder %v765, 0.0
    %vm784 = vcmp.ge.f32.partialorder %v770, 0.0
    %vm785 = vcmp.ge.f32.partialorder %v775, 0.0
    %vm786 = vcmp.ge.f32.partialorder %v780, 0.0
    %v787 = vstv %s43
    %v788 = vmul.f32 %v787, %v765
    %v789 = vmul.f32 %v787, %v770
    %v790 = vmul.f32 %v787, %v775
    %v791 = vmul.f32 %v787, %v780
    %v792 = vsel %vm783, %v765, %v788
    %v793 = vsel %vm784, %v770, %v789
    %v794 = vsel %vm785, %v775, %v790
    %v795 = vsel %vm786, %v780, %v791
    %796 = vxpose.xlu0.b32.start [1/16] %v792, 128
    %797 = vxpose.xlu0.b32.cont [2/16] %v793, 128
    %798 = vxpose.xlu0.b32.cont [3/16] %v794, 128
    %799 = vxpose.xlu0.b32.cont [4/16] %v795, 128
    %800 = vxpose.xlu0.b32.cont [5/16] 0.0, 128
    %801 = vxpose.xlu0.b32.cont [6/16] 0.0, 128
    %802 = vxpose.xlu0.b32.cont [7/16] 0.0, 128
    %803 = vxpose.xlu0.b32.cont [8/16] 0.0, 128
    %804 = vxpose.xlu0.b32.cont [9/16] 0.0, 128
    %805 = vxpose.xlu0.b32.cont [10/16] 0.0, 128
    %806 = vxpose.xlu0.b32.cont [11/16] 0.0, 128
    %807 = vxpose.xlu0.b32.cont [12/16] 0.0, 128
    %808 = vxpose.xlu0.b32.cont [13/16] 0.0, 128
    %809 = vxpose.xlu0.b32.cont [14/16] 0.0, 128
    %810 = vxpose.xlu0.b32.cont [15/16] 0.0, 128
    %811 = vxpose.xlu0.b32.end [16/16] 0.0, 128
    %v812 = vpop.trf.xlu0
    %v813 = vpop.trf.xlu0
    %v814 = vpop.trf.xlu0
    %v815 = vpop.trf.xlu0
    %v816 = vpop.trf.xlu0
    %v817 = vpop.trf.xlu0
    %v818 = vpop.trf.xlu0
    %v819 = vpop.trf.xlu0
    %v820 = vpop.trf.xlu0
    %v821 = vpop.trf.xlu0
    %v822 = vpop.trf.xlu0
    %v823 = vpop.trf.xlu0
    %v824 = vpop.trf.xlu0
    %v825 = vpop.trf.xlu0
    %v826 = vpop.trf.xlu0
    %v827 = vpop.trf.xlu0
    %828 = vst.msk [vmem:[%s7] sm:$0xff] %vm571, %v812
    %829 = vst.msk [vmem:[%s7 + $0x8] sm:$0xff] %vm571, %v813
    %830 = vst.msk [vmem:[%s7 + $0x10] sm:$0xff] %vm571, %v814
    %831 = vst.msk [vmem:[%s7 + $0x18] sm:$0xff] %vm571, %v815
    %832 = vst.msk [vmem:[%s7 + $0x20] sm:$0xff] %vm571, %v816
    %833 = vst.msk [vmem:[%s7 + $0x28] sm:$0xff] %vm571, %v817
    %834 = vst.msk [vmem:[%s7 + $0x30] sm:$0xff] %vm571, %v818
    %835 = vst.msk [vmem:[%s7 + $0x38] sm:$0xff] %vm571, %v819
    %836 = vst.msk [vmem:[%s7 + $0x40] sm:$0xff] %vm571, %v820
    %837 = vst.msk [vmem:[%s7 + $0x48] sm:$0xff] %vm571, %v821
    %838 = vst.msk [vmem:[%s7 + $0x50] sm:$0xff] %vm571, %v822
    %839 = vst.msk [vmem:[%s7 + $0x58] sm:$0xff] %vm571, %v823
    %840 = vst.msk [vmem:[%s7 + $0x60] sm:$0xff] %vm571, %v824
    %841 = vst.msk [vmem:[%s7 + $0x68] sm:$0xff] %vm571, %v825
    %842 = vst.msk [vmem:[%s7 + $0x70] sm:$0xff] %vm571, %v826
    %843 = vst.msk [vmem:[%s7 + $0x78] sm:$0xff] %vm571, %v827
    // Predicated region
    $region34: #{polarnet_forward.1} parent=1 // pred_check
      _
    $region35: #{polarnet_forward.1} parent=1 // pred_check_branch
      %845 = sbr.rel (0) target = $region37
    $region36: #{polarnet_forward.1} parent=1 // pred_region
      _
    $region37: #{polarnet_forward.1} parent=1 // pred_fallthru
      _
    // Predicated region
    $region38: #{polarnet_forward.1} parent=1 // pred_check
      _
    $region39: #{polarnet_forward.1} parent=1 // pred_check_branch
      %847 = sbr.rel (0) target = $region41
    $region40: #{polarnet_forward.1} parent=1 // pred_region
      _
    $region41: #{polarnet_forward.1} parent=1 // pred_fallthru
      _
    %848 = vsyncpa [#allocation3], 1

</llo_original>
